<compile_context>
chip_gen: v5e
topology: v5e:2x2
jax: 0.10.0
libtpu: 0.0.40
codegen_flags: <defaults>
</compile_context>

<pallas_src>
import jax
import jax.numpy as jnp
from jax.experimental import pallas as pl
from jax.experimental.pallas import tpu as pltpu


_DEFAULT_TILE_ROWS = 512                 # multiple of 32 -> valid for 4/2/1-byte dtypes
_LANE_CANDIDATES = (1024, 512, 256, 128)  # widest lane-dense width that divides n


def _make_binarize_kernel(output_is_01: bool):
    """Build a kernel specialized (at trace time) on the static flag."""

    def kernel(x_ref, o_ref):
        x = x_ref[...]
        dt = o_ref.dtype
        if output_is_01:
            thr = jnp.asarray(0.5, dt)
            lo = jnp.asarray(0.0, dt)
        else:
            thr = jnp.asarray(0.0, dt)
            lo = jnp.asarray(-1.0, dt)
        hi = jnp.asarray(1.0, dt)
        # single compare + select, dtype-preserving
        o_ref[...] = jnp.where(x > thr, hi, lo)

    return kernel


def binarize_forward_only(
    x: jax.Array,
    output_is_01: bool = True,
    *,
    tile_rows: int = _DEFAULT_TILE_ROWS,
) -> jax.Array:
    orig_shape = x.shape
    dtype = x.dtype
    n = x.size

    # Pick the widest lane width that evenly divides n -> no pad, no slice.
    lanes = None
    for cand in _LANE_CANDIDATES:
        if n % cand == 0:
            lanes = cand
            break

    x_flat = jnp.ravel(x)
    trailing_pad = 0
    if lanes is None:
        # Ragged element count: pad the tail up to one 128-lane row (rare path).
        lanes = 128
        rows = pl.cdiv(n, lanes)
        trailing_pad = rows * lanes - n
        x_flat = jnp.pad(x_flat, (0, trailing_pad))
    else:
        rows = n // lanes

    x2d = x_flat.reshape(rows, lanes)

    if rows <= tile_rows:
        # Single full-array block: block_shape == array dims, always legal.
        block_rows = rows
        grid = (1,)
    else:
        # Streamed, double-buffered tiles; ragged last tile is masked by Pallas.
        block_rows = tile_rows
        grid = (pl.cdiv(rows, tile_rows),)

    out2d = pl.pallas_call(
        _make_binarize_kernel(bool(output_is_01)),
        out_shape=jax.ShapeDtypeStruct((rows, lanes), dtype),
        grid=grid,
        in_specs=[pl.BlockSpec((block_rows, lanes), lambda i: (i, 0))],
        out_specs=pl.BlockSpec((block_rows, lanes), lambda i: (i, 0)),
        compiler_params=pltpu.CompilerParams(
            dimension_semantics=("parallel",),
        ),
    )(x2d)

    if trailing_pad:
        return out2d.reshape(-1)[:n].reshape(orig_shape)
    return out2d.reshape(orig_shape)


if __name__ == "__main__":
    key = jax.random.PRNGKey(0)

    # NCHW-like activation tensor (module default use-case)
    x = jax.random.normal(key, (2, 4, 16, 16), dtype=jnp.float32)

    # output_is_01 = True (module default): y in {0, 1}
    y01 = binarize_forward_only(x, output_is_01=True)
    jax.block_until_ready(y01)
    ref01 = (x > 0.5).astype(x.dtype)
    assert jnp.array_equal(y01, ref01), "output_is_01=True mismatch"

    # output_is_01 = False: y in {-1, +1}
    ypm = binarize_forward_only(x, output_is_01=False)
    jax.block_until_ready(ypm)
    refpm = jnp.where(x > 0.0, 1.0, -1.0).astype(x.dtype)
    assert jnp.array_equal(ypm, refpm), "output_is_01=False mismatch"

    # Exercise the multi-tile grid path (small tile override, evenly divided).
    x2 = jax.random.normal(jax.random.PRNGKey(0), (4, 8, 32, 32), dtype=jnp.float32)
    y2 = binarize_forward_only(x2, output_is_01=True, tile_rows=8)
    jax.block_until_ready(y2)
    assert jnp.array_equal(y2, (x2 > 0.5).astype(x2.dtype)), "tiled path mismatch"

    # Exercise a ragged last grid tile (rows not a multiple of tile_rows).
    x3 = jax.random.normal(jax.random.PRNGKey(0), (5, 8, 32, 32), dtype=jnp.float32)
    y3 = binarize_forward_only(x3, output_is_01=False, tile_rows=16)
    jax.block_until_ready(y3)
    assert jnp.array_equal(
        y3, jnp.where(x3 > 0.0, 1.0, -1.0).astype(x3.dtype)
    ), "ragged tile mismatch"

    # Exercise the ragged-element-count fallback path (n not divisible by 128).
    x4 = jax.random.normal(jax.random.PRNGKey(0), (3, 5, 7, 11), dtype=jnp.float32)
    y4 = binarize_forward_only(x4, output_is_01=False)
    jax.block_until_ready(y4)
    assert jnp.array_equal(
        y4, jnp.where(x4 > 0.0, 1.0, -1.0).astype(x4.dtype)
    ), "ragged fallback mismatch"

    print("KERNEL_OK")
</pallas_src>

<mosaic_0001>
module attributes {stable_mosaic.version = 11 : i64} {
  func.func @kernel(%arg0: i32, %arg1: memref<2x1024xf32, #tpu.memory_space<vmem>>, %arg2: memref<2x1024xf32, #tpu.memory_space<vmem>>) attributes {dimension_semantics = [#tpu.dimension_semantics<parallel>], iteration_bounds = array<i64: 1>, scalar_prefetch = 0 : i64, scratch_operands = 0 : i64, tpu.core_type = #tpu.core_type<tc>, window_params = [{transform_indices = @transform_0, window_bounds = array<i64: 2, 1024>}, {transform_indices = @transform_1, window_bounds = array<i64: 2, 1024>}]} {
    %c0 = arith.constant 0 : index
    %c0_0 = arith.constant 0 : index
    %0 = vector.load %arg1[%c0, %c0_0] : memref<2x1024xf32, #tpu.memory_space<vmem>>, vector<2x1024xf32>
    %cst = arith.constant 5.000000e-01 : f32
    %1 = vector.broadcast %cst : f32 to vector<2x1024xf32>
    %2 = arith.cmpf ogt, %0, %1 : vector<2x1024xf32>
    %cst_1 = arith.constant 1.000000e+00 : f32
    %cst_2 = arith.constant 0.000000e+00 : f32
    %3 = vector.broadcast %cst_1 : f32 to vector<2x1024xf32>
    %4 = vector.broadcast %cst_2 : f32 to vector<2x1024xf32>
    %5 = arith.select %2, %3, %4 : vector<2x1024xi1>, vector<2x1024xf32>
    %c0_3 = arith.constant 0 : index
    %c0_4 = arith.constant 0 : index
    %6 = vector.load %arg2[%c0_3, %c0_4] : memref<2x1024xf32, #tpu.memory_space<vmem>>, vector<2x1024xf32>
    tpu.vector_store %arg2[%c0_3, %c0_4], %5 {strides = array<i32>} : memref<2x1024xf32, #tpu.memory_space<vmem>>, vector<2x1024xf32>,
    return
  }
  func.func @transform_0(%arg0: i32) -> (i32, i32) {
    %c0_i32 = arith.constant 0 : i32
    %c0_i32_0 = arith.constant 0 : i32
    return %arg0, %c0_i32 : i32, i32
  }
  func.func @transform_1(%arg0: i32) -> (i32, i32) {
    %c0_i32 = arith.constant 0 : i32
    %c0_i32_0 = arith.constant 0 : i32
    return %arg0, %c0_i32 : i32, i32
  }
}

</mosaic_0001>

<llo_original>
// kernel: tpu_custom_call.1
$region0: #{tpu_custom_call.1}
  #allocation0 [shape = 'u32[]', space=smem, size = 0x4, offset = 0x4, fixed_abs, tag = 'smem constant byte address 0x4 - core index']
  #allocation1 [shape = 'u32[72,128]{1,0:T(1,128)}', space=vmem, size = 0x9000, scoped, tag = 'internal scratch']
  %s0 = inlined_call_operand.hbm [shape: f32[2,1024], index: 0, kind: input, shape index: {}]
  %s1 = inlined_call_operand.hbm [shape: f32[2,1024], index: 1, kind: output, shape index: {}]
  %s2 = sld [smem:[#allocation0]]
  $region18: #{tpu_custom_call.1} parent=0
    _
  %s4 = ssub.s32 1, %s2
  %s5 = scalar_select 0, %s4, %s2
  $region1: #{tpu_custom_call.1} parent=0
    #allocation2 [shape = 'u8[8192]{0}', space=vmem, size = 0x2000, scoped, tag = 'input window, operand 0, single buffered']
    #allocation3 [shape = 's32[1]{0}', space=sflag, size = 0x4, scoped, tag = 'scoped memory for tpu_custom_call.1']
    #allocation4 [shape = 's32[1]{0}', space=sflag, size = 0x4, scoped, tag = 'scoped memory for tpu_custom_call.1']
    #allocation5 [shape = 'u8[8192]{0}', space=vmem, size = 0x2000, scoped, tag = 'output window, operand 0, single buffered']
    %6 = vsyncpa [#allocation3], 0
    %7 = vsyncpa [#allocation4], 0
    // Predicated region
    $region2: #{tpu_custom_call.1} parent=1 // pred_check
      _
    $region3: #{tpu_custom_call.1} parent=1 // pred_check_branch
      %9 = sbr.rel (0) target = $region5
    $region4: #{tpu_custom_call.1} parent=1 // pred_region
      %11 = vsyncadd [#allocation3], 0
      %s13 = sshll.u32 %s0, 4
      %s14 = int_to_ptr.hbm [resolvable:$true] %s13
      %s15 = sshll.u32 [#allocation2], 4
      %s16 = int_to_ptr.vmem [resolvable:$true] %s15
      %18 = dma.hbm_to_vmem [thread:$0]  %s14, 256, %s16, [#allocation3]
    $region5: #{tpu_custom_call.1} parent=1 // pred_fallthru
      _
    // Predicated region
    $region6: #{tpu_custom_call.1} parent=1 // pred_check
      _
    $region7: #{tpu_custom_call.1} parent=1 // pred_check_branch
      %20 = sbr.rel (0) target = $region9
    $region8: #{tpu_custom_call.1} parent=1 // pred_region
      %22 = dma.done [#allocation3], 256
    $region9: #{tpu_custom_call.1} parent=1 // pred_fallthru
      _
    %v23 = vld [vmem:[#allocation2] sm:$0xff]
    %v24 = vld [vmem:[#allocation2 + $0x8] sm:$0xff]
    %vm25 = vcmp.gt.f32.partialorder %v23, 0.5
    %vm26 = vcmp.gt.f32.partialorder %v24, 0.5
    %v27 = vsel %vm25, 1.0, 0.0
    %v28 = vsel %vm26, 1.0, 0.0
    %29 = vst [vmem:[#allocation5] sm:$0xff] %v27
    %30 = vst [vmem:[#allocation5 + $0x8] sm:$0xff] %v28
    // Predicated region
    $region10: #{tpu_custom_call.1} parent=1 // pred_check
      _
    $region11: #{tpu_custom_call.1} parent=1 // pred_check_branch
      %32 = sbr.rel (0) target = $region13
    $region12: #{tpu_custom_call.1} parent=1 // pred_region
      %34 = vsyncadd [#allocation4], 0
      %s36 = sshll.u32 [#allocation5], 4
      %s37 = int_to_ptr.vmem [resolvable:$true] %s36
      %s38 = sshll.u32 %s1, 4
      %s39 = int_to_ptr.hbm [resolvable:$true] %s38
      %41 = dma.vmem_to_hbm [thread:$0]  %s37, 256, %s39, [#allocation4]
    $region13: #{tpu_custom_call.1} parent=1 // pred_fallthru
      _
    // Predicated region
    $region14: #{tpu_custom_call.1} parent=1 // pred_check
      _
    $region15: #{tpu_custom_call.1} parent=1 // pred_check_branch
      %43 = sbr.rel (0) target = $region17
    $region16: #{tpu_custom_call.1} parent=1 // pred_region
      %45 = dma.done [#allocation4], 256
    $region17: #{tpu_custom_call.1} parent=1 // pred_fallthru
      _
    %46 = vsyncpa [#allocation3], 1
    %47 = vsyncpa [#allocation4], 1

</llo_original>
